<compile_context>
chip_gen: v5e
topology: v5e:2x2
jax: 0.10.0
libtpu: 0.0.40
codegen_flags: <defaults>
</compile_context>

<pallas_src>
import jax
import jax.numpy as jnp
from jax.experimental import pallas as pl
from jax.experimental.pallas import tpu as pltpu

_LANE = 128
_SUBLANE = 8
_MAX_TILE_R = 4096   # sublane-rows per grid step (4096*128 samples/step)


def linear_kernel(x_ref, w_ref, b_ref, o_ref):
    # x_ref: (F, TILE_R, 128) VMEM; w_ref: (F,) SMEM; b_ref: (1,) SMEM.
    # o_ref: (TILE_R, 128) VMEM -- dense, full-vreg output slab.
    F = x_ref.shape[0]
    acc = x_ref[0] * w_ref[0]
    for j in range(1, F):                  # static unroll; F is tiny (=2)
        acc = acc + x_ref[j] * w_ref[j]
    o_ref[...] = acc + b_ref[0]


def linear_forward(x, w, b, *, max_tile_r=_MAX_TILE_R):
    """y = x @ w.T + b  (nn.Linear(F, 1) forward).

    x: (N, F) f32, w: (1, F) f32 (PyTorch layout), b: (1,) f32 -> (N, 1) f32.
    """
    N, F = x.shape

    # Pad N to a multiple of 1024 (8 sublanes x 128 lanes), then balance the
    # tile size across grid steps so the last tile is never mostly padding.
    n_pad = pl.cdiv(N, _SUBLANE * _LANE) * (_SUBLANE * _LANE)
    rows = n_pad // _LANE                                          # multiple of 8
    n_blocks = pl.cdiv(rows, max_tile_r)
    tile_r = pl.cdiv(pl.cdiv(rows, n_blocks), _SUBLANE) * _SUBLANE  # %8 == 0
    rows_pad = n_blocks * tile_r
    n_total = rows_pad * _LANE

    # Layout plumbing: batch index maps to (sublane-row, lane) densely.
    x_p = jnp.pad(x.astype(jnp.float32), ((0, n_total - N), (0, 0)))  # (n_total, F)
    x_t = x_p.T.reshape(F, rows_pad, _LANE)                           # (F, rows, 128)
    w_vec = w.reshape(F).astype(jnp.float32)                          # (F,)  -> SMEM
    b_vec = b.reshape(1).astype(jnp.float32)                          # (1,)  -> SMEM

    out = pl.pallas_call(
        linear_kernel,
        out_shape=jax.ShapeDtypeStruct((rows_pad, _LANE), jnp.float32),
        grid=(n_blocks,),
        in_specs=[
            pl.BlockSpec((F, tile_r, _LANE), lambda i: (0, i, 0)),   # x tiles (VMEM)
            pl.BlockSpec(memory_space=pltpu.MemorySpace.SMEM),       # weight scalars
            pl.BlockSpec(memory_space=pltpu.MemorySpace.SMEM),       # bias scalar
        ],
        out_specs=pl.BlockSpec((tile_r, _LANE), lambda i: (i, 0)),
        compiler_params=pltpu.CompilerParams(
            dimension_semantics=("parallel",),
            vmem_limit_bytes=32 * 1024 * 1024),
        cost_estimate=pl.CostEstimate(
            flops=2 * n_total * F,
            transcendentals=0,
            bytes_accessed=4 * (n_total * F + n_total + F + 1)),
    )(x_t, w_vec, b_vec)

    # Padded tail rows hold y = b; flatten (row-major == sample order) and slice.
    return out.reshape(-1)[:N].reshape(N, 1)


if __name__ == "__main__":
    feature_num = 2
    batch = 8

    key = jax.random.PRNGKey(0)
    kx, kw, kb = jax.random.split(key, 3)

    # Deterministic params, mimicking nn.Linear's U(-1/sqrt(F), 1/sqrt(F)) init.
    bound = 1.0 / jnp.sqrt(jnp.float32(feature_num))
    w = jax.random.uniform(kw, (1, feature_num), jnp.float32, -bound, bound)  # (out=1, in=F)
    b = jax.random.uniform(kb, (1,), jnp.float32, -bound, bound)
    x = jax.random.normal(kx, (batch, feature_num), jnp.float32)

    y = linear_forward(x, w, b)
    y = jax.block_until_ready(y)

    # Reference: plain JAX, same math as nn.Linear forward.
    y_ref = x @ w.T + b
    assert y.shape == (batch, 1)
    assert jnp.allclose(y, y_ref, atol=1e-5, rtol=1e-5)

    print("KERNEL_OK")
</pallas_src>

<mosaic_0001>
module attributes {stable_mosaic.version = 11 : i64} {
  func.func @linear_kernel(%arg0: i32, %arg1: memref<2x8x128xf32, #tpu.memory_space<vmem>>, %arg2: memref<2xf32, #tpu.memory_space<smem>>, %arg3: memref<1xf32, #tpu.memory_space<smem>>, %arg4: memref<8x128xf32, #tpu.memory_space<vmem>>) attributes {dimension_semantics = [#tpu.dimension_semantics<parallel>], iteration_bounds = array<i64: 1>, scalar_prefetch = 0 : i64, scratch_operands = 0 : i64, tpu.core_type = #tpu.core_type<tc>, window_params = [{transform_indices = @transform_0, window_bounds = array<i64: 2, 8, 128>}, {transform_indices = @transform_1, window_bounds = array<i64: 2>}, {transform_indices = @transform_2, window_bounds = array<i64: 1>}, {transform_indices = @transform_3, window_bounds = array<i64: 8, 128>}]} {
    %c0 = arith.constant 0 : index
    %c0_0 = arith.constant 0 : index
    %c0_1 = arith.constant 0 : index
    %0 = vector.load %arg1[%c0, %c0_0, %c0_1] : memref<2x8x128xf32, #tpu.memory_space<vmem>>, vector<1x8x128xf32>
    %1 = vector.shape_cast %0 : vector<1x8x128xf32> to vector<8x128xf32>
    %c0_2 = arith.constant 0 : index
    %2 = memref.load %arg2[%c0_2] : memref<2xf32, #tpu.memory_space<smem>>
    %3 = vector.broadcast %2 : f32 to vector<8x128xf32>
    %4 = arith.mulf %1, %3 : vector<8x128xf32>
    %c1 = arith.constant 1 : index
    %c0_3 = arith.constant 0 : index
    %c0_4 = arith.constant 0 : index
    %5 = vector.load %arg1[%c1, %c0_3, %c0_4] : memref<2x8x128xf32, #tpu.memory_space<vmem>>, vector<1x8x128xf32>
    %6 = vector.shape_cast %5 : vector<1x8x128xf32> to vector<8x128xf32>
    %c1_5 = arith.constant 1 : index
    %7 = memref.load %arg2[%c1_5] : memref<2xf32, #tpu.memory_space<smem>>
    %8 = vector.broadcast %7 : f32 to vector<8x128xf32>
    %9 = arith.mulf %6, %8 : vector<8x128xf32>
    %10 = arith.addf %4, %9 : vector<8x128xf32>
    %c0_6 = arith.constant 0 : index
    %11 = memref.load %arg3[%c0_6] : memref<1xf32, #tpu.memory_space<smem>>
    %12 = vector.broadcast %11 : f32 to vector<8x128xf32>
    %13 = arith.addf %10, %12 : vector<8x128xf32>
    %c0_7 = arith.constant 0 : index
    %c0_8 = arith.constant 0 : index
    %14 = vector.load %arg4[%c0_7, %c0_8] : memref<8x128xf32, #tpu.memory_space<vmem>>, vector<8x128xf32>
    tpu.vector_store %arg4[%c0_7, %c0_8], %13 {strides = array<i32>} : memref<8x128xf32, #tpu.memory_space<vmem>>, vector<8x128xf32>,
    return
  }
  func.func @transform_0(%arg0: i32) -> (i32, i32, i32) {
    %c0_i32 = arith.constant 0 : i32
    %c0_i32_0 = arith.constant 0 : i32
    %c0_i32_1 = arith.constant 0 : i32
    return %c0_i32, %arg0, %c0_i32_0 : i32, i32, i32
  }
  func.func @transform_1(%arg0: i32) -> i32 {
    %c0_i32 = arith.constant 0 : i32
    %c0_i32_0 = arith.constant 0 : i32
    return %c0_i32 : i32
  }
  func.func @transform_2(%arg0: i32) -> i32 {
    %c0_i32 = arith.constant 0 : i32
    %c0_i32_0 = arith.constant 0 : i32
    return %c0_i32 : i32
  }
  func.func @transform_3(%arg0: i32) -> (i32, i32) {
    %c0_i32 = arith.constant 0 : i32
    %c0_i32_0 = arith.constant 0 : i32
    return %arg0, %c0_i32 : i32, i32
  }
}

</mosaic_0001>

<llo_original>
// kernel: tpu_custom_call.1
$region0: #{tpu_custom_call.1}
  #allocation0 [shape = 'u32[]', space=smem, size = 0x4, offset = 0x4, fixed_abs, tag = 'smem constant byte address 0x4 - core index']
  #allocation1 [shape = 'u32[72,128]{1,0:T(1,128)}', space=vmem, size = 0x9000, scoped, tag = 'internal scratch']
  #allocation2 [shape = 'f32[1]{0:T(128)S(6)}', space=smem, size = 0x200, scoped, tag = 'scoped memory for tpu_custom_call.1']
  %s0 = inlined_call_operand.hbm [shape: f32[2,8,128], index: 0, kind: input, shape index: {}]
  %s1 = inlined_call_operand.vmem [shape: f32[2], index: 1, kind: input, shape index: {}]
  %s2 = inlined_call_operand.<no memory space> [shape: f32[1], index: 2, kind: input, shape index: {}]
  %s3 = inlined_call_operand.hbm [shape: f32[8,128], index: 3, kind: output, shape index: {}]
  %s4 = sld [smem:[#allocation0]]
  $region30: #{tpu_custom_call.1} parent=0
    _
  %s6 = ssub.s32 1, %s4
  %s7 = scalar_select 0, %s6, %s4
  %8 = sst [smem:[#allocation2]] %s2
  $region1: #{tpu_custom_call.1} parent=0
    #allocation3 [shape = 'u8[8192]{0}', space=vmem, size = 0x2000, scoped, tag = 'input window, operand 0, single buffered']
    #allocation4 [shape = 's32[1]{0}', space=sflag, size = 0x4, scoped, tag = 'scoped memory for tpu_custom_call.1']
    #allocation5 [shape = 's32[1]{0}', space=sflag, size = 0x4, scoped, tag = 'scoped memory for tpu_custom_call.1']
    #allocation6 [shape = 's32[1]{0}', space=sflag, size = 0x4, scoped, tag = 'scoped memory for tpu_custom_call.1']
    #allocation7 [shape = 'u8[512]{0}', space=smem, size = 0x200, scoped, tag = 'input window, operand 1, single buffered']
    #allocation8 [shape = 'u8[4096]{0}', space=vmem, size = 0x1000, scoped, tag = 'output window, operand 0, single buffered']
    %9 = vsyncpa [#allocation4], 0
    %10 = vsyncpa [#allocation6], 0
    %11 = vsyncpa [#allocation5], 0
    // Predicated region
    $region2: #{tpu_custom_call.1} parent=1 // pred_check
      _
    $region3: #{tpu_custom_call.1} parent=1 // pred_check_branch
      %13 = sbr.rel (0) target = $region5
    $region4: #{tpu_custom_call.1} parent=1 // pred_region
      %15 = vsyncadd [#allocation4], 0
      %s16 = sshll.u32 %s0, 4
      %s17 = int_to_ptr.hbm [resolvable:$true] %s16
      %s18 = sshll.u32 [#allocation3], 4
      %s19 = int_to_ptr.vmem [resolvable:$true] %s18
      %24 = dma.hbm_to_vmem [thread:$0]  %s17, 256, %s19, [#allocation4], 128, 128, 8
    $region5: #{tpu_custom_call.1} parent=1 // pred_fallthru
      _
    // Predicated region
    $region6: #{tpu_custom_call.1} parent=1 // pred_check
      _
    $region7: #{tpu_custom_call.1} parent=1 // pred_check_branch
      %26 = sbr.rel (0) target = $region9
    $region8: #{tpu_custom_call.1} parent=1 // pred_region
      %28 = vsyncadd [#allocation6], 0
      %s30 = sshll.u32 %s1, 4
      %s31 = int_to_ptr.vmem [resolvable:$true] %s30
      %33 = dma.vmem_to_smem %s31, 16, [#allocation7], [#allocation6]
    $region9: #{tpu_custom_call.1} parent=1 // pred_fallthru
      _
    // Predicated region
    $region10: #{tpu_custom_call.1} parent=1 // pred_check
      _
    $region11: #{tpu_custom_call.1} parent=1 // pred_check_branch
      %35 = sbr.rel (0) target = $region13
    $region12: #{tpu_custom_call.1} parent=1 // pred_region
      _
    $region13: #{tpu_custom_call.1} parent=1 // pred_fallthru
      _
    // Predicated region
    $region14: #{tpu_custom_call.1} parent=1 // pred_check
      _
    $region15: #{tpu_custom_call.1} parent=1 // pred_check_branch
      %37 = sbr.rel (0) target = $region17
    $region16: #{tpu_custom_call.1} parent=1 // pred_region
      %39 = dma.done [#allocation4], 256
    $region17: #{tpu_custom_call.1} parent=1 // pred_fallthru
      _
    // Predicated region
    $region18: #{tpu_custom_call.1} parent=1 // pred_check
      _
    $region19: #{tpu_custom_call.1} parent=1 // pred_check_branch
      %41 = sbr.rel (0) target = $region21
    $region20: #{tpu_custom_call.1} parent=1 // pred_region
      %43 = dma.done [#allocation6], 16
    $region21: #{tpu_custom_call.1} parent=1 // pred_fallthru
      _
    %44 = sfence
    %v45 = vld [vmem:[#allocation3] sm:$0xff]
    %s46 = sld [smem:[#allocation7]]
    %v47 = vstv %s46
    %v48 = vmul.f32 %v45, %v47
    %s49 = scalar_lea.vmem [#allocation3], 8
    %v50 = vld [vmem:[%s49] sm:$0xff]
    %s51 = sld [smem:[#allocation7 + $0x1]]
    %v52 = vstv %s51
    %v53 = vmul.f32 %v50, %v52
    %v54 = vadd.f32 %v48, %v53
    %s55 = sld [smem:[#allocation2]]
    %v56 = vstv %s55
    %v57 = vadd.f32 %v54, %v56
    %58 = vst [vmem:[#allocation8] sm:$0xff] %v57
    // Predicated region
    $region22: #{tpu_custom_call.1} parent=1 // pred_check
      _
    $region23: #{tpu_custom_call.1} parent=1 // pred_check_branch
      %60 = sbr.rel (0) target = $region25
    $region24: #{tpu_custom_call.1} parent=1 // pred_region
      %62 = vsyncadd [#allocation5], 0
      %s64 = sshll.u32 [#allocation8], 4
      %s65 = int_to_ptr.vmem [resolvable:$true] %s64
      %s66 = sshll.u32 %s3, 4
      %s67 = int_to_ptr.hbm [resolvable:$true] %s66
      %69 = dma.vmem_to_hbm [thread:$0]  %s65, 128, %s67, [#allocation5]
    $region25: #{tpu_custom_call.1} parent=1 // pred_fallthru
      _
    // Predicated region
    $region26: #{tpu_custom_call.1} parent=1 // pred_check
      _
    $region27: #{tpu_custom_call.1} parent=1 // pred_check_branch
      %71 = sbr.rel (0) target = $region29
    $region28: #{tpu_custom_call.1} parent=1 // pred_region
      %73 = dma.done [#allocation5], 128
    $region29: #{tpu_custom_call.1} parent=1 // pred_fallthru
      _
    %74 = vsyncpa [#allocation4], 1
    %75 = vsyncpa [#allocation5], 1
    %76 = vsyncpa [#allocation6], 1

</llo_original>
